<compile_context>
chip_gen: v7x
topology: tpu7x:2x2x1
jax: 0.10.0
libtpu: 0.0.40
codegen_flags: <defaults>
</compile_context>

<pallas_src>
import jax
import jax.numpy as jnp
from jax import lax
from jax.experimental import pallas as pl
from jax.experimental.pallas import tpu as pltpu

_VMEM_LIMIT = 32 * 1024 * 1024  # explicit scoped-VMEM budget, safe on v5e/v6e/v7x


def _pick_tile_n(h, w, n):
    """Points per reduction tile, chosen so the live per-tile intermediates
    (W one-hot + (3H, tn) stage-1 result + H mask + lhs/rhs) stay ~6 MiB."""
    budget = 6 * 1024 * 1024
    per_point = 4 * (w + 4 * h + 32)
    t = budget // max(per_point, 1)
    t = max(128, min(4096, (t // 128) * 128))
    return n if n <= t else t


def _pick_tile_hw(hw):
    """Lane tile for kernel 2 (multiple of 128, or full extent for small grids)."""
    if hw <= 8192:
        return hw
    for t in (8192, 4096, 2048, 1024, 512, 256, 128):
        if hw % t == 0:
            return t
    return hw


def _stats_kernel(fs_ref, pk_ref, out_ref):
    """Per (batch, split, N-tile): two-stage one-hot gather of pointwise flow/staticness
    (W one-hot MXU matmul, then H mask-multiply + sublane reduce) and accumulation of all
    weighted-Kabsch sufficient statistics plus the positive-weight count into a single
    (5, 5) moment matrix (output block is the resident accumulator over the N axis)."""
    k = pl.program_id(2)

    @pl.when(k == 0)
    def _():
        out_ref[...] = jnp.zeros_like(out_ref)

    fs = fs_ref[0]                       # (3*H, W)  rows ordered (c, h): c=0,1 flow, c=2 staticness
    pk = pk_ref[0]                       # (6, tn)   rows: pc xyz, valid, voxel x, voxel y
    hh = fs.shape[0] // 3
    ww = fs.shape[1]
    tn = pk.shape[1]

    p0 = pk[0:3]                         # (3, tn)  cloud_t0 = pc[:, :, :3]^T
    valid = pk[3:4]                      # (1, tn)  float validity mask
    x_i = pk[4:5].astype(jnp.int32)      # (1, tn)  voxel row index (H axis), exact small ints
    y_i = pk[5:6].astype(jnp.int32)      # (1, tn)  voxel col index (W axis)

    # Stage 1: gather along W with a (W, tn) one-hot matmul -> (3H, tn), lane-dense in N.
    w_ids = lax.broadcasted_iota(jnp.int32, (ww, tn), 0)
    onehot_w = (w_ids == y_i).astype(jnp.float32)                           # (W, tn)
    g_w = jnp.dot(fs, onehot_w, preferred_element_type=jnp.float32)         # (3H, tn)

    # Stage 2: gather along H with a (H, tn) mask-multiply + sublane (XLU) reduce.
    h_ids = lax.broadcasted_iota(jnp.int32, (hh, tn), 0)
    mask_h = (h_ids == x_i).astype(jnp.float32)                             # (H, tn)
    flow_x = jnp.sum(g_w[0 * hh:1 * hh] * mask_h, axis=0, keepdims=True)    # (1, tn)
    flow_y = jnp.sum(g_w[1 * hh:2 * hh] * mask_h, axis=0, keepdims=True)
    stat = jnp.sum(g_w[2 * hh:3 * hh] * mask_h, axis=0, keepdims=True)

    wgt = stat * valid                                                      # kabsch weights
    pos = (wgt > 0.0).astype(jnp.float32)                                   # positive-weight count
    ones1 = jnp.ones_like(wgt)
    z1 = jnp.zeros_like(wgt)

    # cloud_t1 = pc_xyz + (pc_xyz + pointwise_flow) = 2*pc_xyz + pointwise_flow (z-flow = 0)
    p1 = 2.0 * p0 + jnp.concatenate([flow_x, flow_y, z1], axis=0)           # (3, tn)

    lhs = jnp.concatenate([wgt * p0, wgt, pos], axis=0)                     # (5, tn)
    rhs = jnp.concatenate([p1, ones1, ones1], axis=0)                       # (5, tn)

    # moments[i, j] = sum_n lhs[i, n] * rhs[j, n]
    #   [:3,:3] = sum w p0 p1^T   [:3,3] = sum w p0   [3,:3] = sum w p1
    #   [3,3]   = sum w           [4,3]  = #(w > 0)
    moments = lax.dot_general(lhs, rhs, (((1,), (1,)), ((), ())),
                              preferred_element_type=jnp.float32)           # (5, 5)
    out_ref[0, 0] += moments


def _apply_trafo_kernel(a_ref, g_ref, o_ref):
    """out-tile = A(2*bs, 3) @ hom_grid_tile(3, tile_hw): lane-dense store per HW tile."""
    o_ref[...] = jnp.dot(a_ref[...], g_ref[...], preferred_element_type=jnp.float32)


def static_aggregated_flow(static_flow, staticness, pc,
                           pointwise_voxel_coordinates_fs,
                           pointwise_valid_mask,
                           voxel_center_metric_coordinates,
                           use_eps_for_weighted_pc_alignment=False):
    bs, ch, h, w = static_flow.shape
    assert ch == 2
    n = pc.shape[1]
    hw = h * w

    # ---- wrapper-side layout (reshapes only; no NCHW->NHWC relayout) ----
    fs = jnp.concatenate([static_flow.astype(jnp.float32),
                          staticness.astype(jnp.float32)[:, None]], axis=1)  # (bs, 3, H, W)
    fs_rs = fs.reshape(bs, 3 * h, w)                                          # (bs, 3H, W)

    pc_t = jnp.transpose(pc[:, :, :3].astype(jnp.float32), (0, 2, 1))         # (bs, 3, N)
    valid_f = pointwise_valid_mask.astype(jnp.float32)[:, None]               # (bs, 1, N)
    x_f = pointwise_voxel_coordinates_fs[:, :, 0].astype(jnp.float32)[:, None]
    y_f = pointwise_voxel_coordinates_fs[:, :, 1].astype(jnp.float32)[:, None]
    # single packed per-point operand: one DMA stream, one padded block
    pk = jnp.concatenate([pc_t, valid_f, x_f, y_f], axis=1)                   # (bs, 6, N)

    # ---- HW-aware N tiling + optional 2-way core split of the reduction ----
    tile_n = _pick_tile_n(h, w, n)
    n_tiles = -(-n // tile_n)
    n_split = 2 if n_tiles >= 2 else 1            # megacore split of the N reduction (v7x)
    ntps = -(-n_tiles // n_split)                 # tiles per split
    n_pad = n_split * ntps * tile_n
    if n_pad != n:
        # padded points: valid = 0 -> w = 0, pos = 0 -> zero lhs column -> no contribution.
        pk = jnp.pad(pk, ((0, 0), (0, 0), (0, n_pad - n)))

    # ---- kernel 1: fused two-stage gather + weighted-moment / count accumulation ----
    partial = pl.pallas_call(
        _stats_kernel,
        out_shape=jax.ShapeDtypeStruct((bs, n_split, 5, 5), jnp.float32),
        grid_spec=pltpu.PrefetchScalarGridSpec(
            num_scalar_prefetch=0,
            grid=(bs, n_split, ntps),
            in_specs=(
                pl.BlockSpec((1, 3 * h, w), lambda b, s, k: (b, 0, 0)),        # flow+staticness
                pl.BlockSpec((1, 6, tile_n), lambda b, s, k: (b, 0, s * ntps + k)),  # packed pts
            ),
            out_specs=pl.BlockSpec((1, 1, 5, 5), lambda b, s, k: (b, s, 0, 0)),  # accumulator
        ),
        compiler_params=pltpu.CompilerParams(
            dimension_semantics=("parallel", "parallel", "arbitrary"),
            vmem_limit_bytes=_VMEM_LIMIT),
    )(fs_rs, pk)
    moments = partial.sum(axis=1)                                             # (bs, 5, 5)

    # ---- weighted Kabsch (tiny 3x3 algebra; plain JAX) ----
    m = moments[:, :3, :3]
    sp0 = moments[:, :3, 3]
    sp1 = moments[:, 3, :3]
    sw = moments[:, 3, 3]
    cnt = moments[:, 4, 3]

    eps = 1e-6 if use_eps_for_weighted_pc_alignment else 0.0
    denom = sw + eps
    # Guard 0/0 (no positive weights); that branch is always replaced by the identity
    # fallback below (cnt < 3), so observable results are unchanged vs. the reference.
    denom = jnp.where(denom > 0.0, denom, 1.0)
    c0 = sp0 / denom[:, None]
    c1 = sp1 / denom[:, None]
    # sum_i w_i (p0_i - c0)(p1_i - c1)^T
    cov = (m
           - c0[:, :, None] * sp1[:, None, :]
           - sp0[:, :, None] * c1[:, None, :]
           + sw[:, None, None] * c0[:, :, None] * c1[:, None, :])

    # TODO(synk): batched 3x3 SVD / det of WeightedKabschAlgorithm has no clean Pallas TPU
    # equivalent; computed with jnp.linalg in plain JAX (negligible cost).
    u, _, vt = jnp.linalg.svd(cov)
    v = jnp.swapaxes(vt, -1, -2)
    ut = jnp.swapaxes(u, -1, -2)
    det_sign = jnp.sign(jnp.linalg.det(jnp.matmul(v, ut)))
    d = jnp.concatenate([jnp.ones((bs, 2), jnp.float32), det_sign[:, None]], axis=-1)
    r = jnp.matmul(v * d[:, None, :], ut)                   # V diag(1,1,d) U^T
    t = c1 - jnp.einsum('bij,bj->bi', r, c0)

    trafo = jnp.zeros((bs, 4, 4), jnp.float32)
    trafo = trafo.at[:, :3, :3].set(r)
    trafo = trafo.at[:, :3, 3].set(t)
    trafo = trafo.at[:, 3, 3].set(1.0)

    not_enough_points = cnt < 3.0
    # TODO(synk): WeightedKabschAlgorithm source not provided; assume identity fallback
    # when there are fewer than 3 positively-weighted points.
    eye4 = jnp.broadcast_to(jnp.eye(4, dtype=jnp.float32), (bs, 4, 4))
    trafo = jnp.where(not_enough_points[:, None, None], eye4, trafo)

    # ---- kernel 2: static_aggr_flow = ((T - I)[:, :2, (x,y,1)] @ hom_grid^T), HW-tiled ----
    vcmc = voxel_center_metric_coordinates.astype(jnp.float32)                # (H, W, 2)
    hom3 = jnp.concatenate([vcmc, jnp.ones_like(vcmc[..., :1])], axis=-1)     # (H, W, 3): x, y, 1
    g3 = hom3.reshape(hw, 3).T                                                # (3, HW)

    a_sub = (trafo - jnp.eye(4, dtype=jnp.float32))[:, :2, :]                 # (bs, 2, 4)
    # drop the z column (hom grid z == 0): columns (0, 1, 3)
    a3 = jnp.concatenate([a_sub[..., :2], a_sub[..., 3:4]], axis=-1).reshape(bs * 2, 3)

    tile_hw = _pick_tile_hw(hw)
    out2 = pl.pallas_call(
        _apply_trafo_kernel,
        out_shape=jax.ShapeDtypeStruct((bs * 2, hw), jnp.float32),
        grid_spec=pltpu.PrefetchScalarGridSpec(
            num_scalar_prefetch=0,
            grid=(hw // tile_hw,),
            in_specs=(
                pl.BlockSpec((bs * 2, 3), lambda i: (0, 0)),
                pl.BlockSpec((3, tile_hw), lambda i: (0, i)),
            ),
            out_specs=pl.BlockSpec((bs * 2, tile_hw), lambda i: (0, i)),
        ),
        compiler_params=pltpu.CompilerParams(
            dimension_semantics=("parallel",),
            vmem_limit_bytes=_VMEM_LIMIT),
    )(a3, g3)

    # matches einsum('bij,bhwj->bhwi', T-I, hom)[..., :2].permute(0, 3, 1, 2)
    static_aggr_flow = out2.reshape(bs, 2, h, w)
    return static_aggr_flow, trafo, not_enough_points


if __name__ == "__main__":
    key = jax.random.PRNGKey(0)
    k1, k2, k3, k4, k5, k6 = jax.random.split(key, 6)
    bs, H, W, N = 2, 16, 16, 16

    static_flow = jax.random.normal(k1, (bs, 2, H, W), jnp.float32)
    staticness = jax.nn.sigmoid(jax.random.normal(k2, (bs, H, W), jnp.float32))
    pc = jax.random.normal(k3, (bs, N, 3), jnp.float32)
    coords = jnp.stack([jax.random.randint(k4, (bs, N), 0, H),
                        jax.random.randint(k5, (bs, N), 0, W)], axis=-1)     # (bs, N, 2), >= 0
    valid = jax.random.uniform(k6, (bs, N)) > 0.2                            # (bs, N) bool
    xs = jnp.linspace(-8.0, 8.0, H)
    ys = jnp.linspace(-8.0, 8.0, W)
    vcmc = jnp.stack(jnp.meshgrid(xs, ys, indexing="ij"), axis=-1)           # (H, W, 2)

    saf, trafo, nep = static_aggregated_flow(
        static_flow, staticness, pc, coords, valid, vcmc,
        use_eps_for_weighted_pc_alignment=True)
    jax.block_until_ready((saf, trafo, nep))

    assert saf.shape == (bs, 2, H, W)
    assert trafo.shape == (bs, 4, 4)
    assert nep.shape == (bs,)
    assert bool(jnp.all(jnp.isfinite(saf))) and bool(jnp.all(jnp.isfinite(trafo)))
    print("KERNEL_OK")
</pallas_src>

<mosaic_0001>
module attributes {stable_mosaic.version = 11 : i64} {
  func.func @_stats_kernel(%arg0: i32, %arg1: i32, %arg2: i32, %arg3: memref<1x48x16xf32, #tpu.memory_space<vmem>>, %arg4: memref<1x6x16xf32, #tpu.memory_space<vmem>>, %arg5: memref<1x1x5x5xf32, #tpu.memory_space<vmem>>) attributes {dimension_semantics = [#tpu.dimension_semantics<parallel>, #tpu.dimension_semantics<parallel>, #tpu.dimension_semantics<arbitrary>], iteration_bounds = array<i64: 2, 1, 1>, scalar_prefetch = 0 : i64, scratch_operands = 0 : i64, tpu.core_type = #tpu.core_type<tc>, window_params = [{transform_indices = @transform_0, window_bounds = array<i64: 1, 48, 16>}, {transform_indices = @transform_1, window_bounds = array<i64: 1, 6, 16>}, {transform_indices = @transform_2, window_bounds = array<i64: 1, 1, 5, 5>}]} {
    %c0_i32 = arith.constant 0 : i32
    %0 = arith.cmpi eq, %arg2, %c0_i32 : i32
    %1 = arith.extui %0 : i1 to i32
    %c0_i32_0 = arith.constant 0 : i32
    %2 = arith.cmpi ne, %1, %c0_i32_0 : i32
    scf.if %2 {
      %cst_22 = arith.constant 0.000000e+00 : f32
      %58 = vector.broadcast %cst_22 : f32 to vector<1x1x5x5xf32>
      %c0_23 = arith.constant 0 : index
      %c0_24 = arith.constant 0 : index
      %c0_25 = arith.constant 0 : index
      %c0_26 = arith.constant 0 : index
      %59 = vector.load %arg5[%c0_23, %c0_24, %c0_25, %c0_26] : memref<1x1x5x5xf32, #tpu.memory_space<vmem>>, vector<1x1x5x5xf32>
      tpu.vector_store %arg5[%c0_23, %c0_24, %c0_25, %c0_26], %58 {strides = array<i32>} : memref<1x1x5x5xf32, #tpu.memory_space<vmem>>, vector<1x1x5x5xf32>,
    } else {
    }
    %c0 = arith.constant 0 : index
    %c0_1 = arith.constant 0 : index
    %c0_2 = arith.constant 0 : index
    %3 = vector.load %arg3[%c0, %c0_1, %c0_2] : memref<1x48x16xf32, #tpu.memory_space<vmem>>, vector<1x48x16xf32>
    %4 = vector.shape_cast %3 : vector<1x48x16xf32> to vector<48x16xf32>
    %c0_3 = arith.constant 0 : index
    %c0_4 = arith.constant 0 : index
    %c0_5 = arith.constant 0 : index
    %5 = vector.load %arg4[%c0_3, %c0_4, %c0_5] : memref<1x6x16xf32, #tpu.memory_space<vmem>>, vector<1x6x16xf32>
    %6 = vector.shape_cast %5 : vector<1x6x16xf32> to vector<6x16xf32>
    %7 = vector.extract_strided_slice %6 {offsets = [0, 0], sizes = [3, 16], strides = [1, 1]} : vector<6x16xf32> to vector<3x16xf32>
    %8 = vector.extract_strided_slice %6 {offsets = [3, 0], sizes = [1, 16], strides = [1, 1]} : vector<6x16xf32> to vector<1x16xf32>
    %9 = vector.extract_strided_slice %6 {offsets = [4, 0], sizes = [1, 16], strides = [1, 1]} : vector<6x16xf32> to vector<1x16xf32>
    %10 = arith.fptosi %9 : vector<1x16xf32> to vector<1x16xi32>
    %11 = vector.extract_strided_slice %6 {offsets = [5, 0], sizes = [1, 16], strides = [1, 1]} : vector<6x16xf32> to vector<1x16xf32>
    %12 = arith.fptosi %11 : vector<1x16xf32> to vector<1x16xi32>
    %13 = tpu.iota {dimensions = array<i32: 0>} : vector<16x16xi32>
    %14 = vector.broadcast %12 : vector<1x16xi32> to vector<16x16xi32>
    %15 = arith.cmpi eq, %13, %14 : vector<16x16xi32>
    %16 = arith.extui %15 : vector<16x16xi1> to vector<16x16xi32>
    %17 = arith.sitofp %16 : vector<16x16xi32> to vector<16x16xf32>
    %cst = arith.constant dense<0.000000e+00> : vector<48x16xf32>
    %18 = tpu.matmul %4, %17, %cst {dimension_numbers = #tpu.dot_dimension_numbers<[1], [0], [0], [1], [0, 0, 1, 1], [], []>} : vector<48x16xf32>, vector<16x16xf32>, vector<48x16xf32> -> vector<48x16xf32>
    %19 = tpu.iota {dimensions = array<i32: 0>} : vector<16x16xi32>
    %20 = vector.broadcast %10 : vector<1x16xi32> to vector<16x16xi32>
    %21 = arith.cmpi eq, %19, %20 : vector<16x16xi32>
    %22 = arith.extui %21 : vector<16x16xi1> to vector<16x16xi32>
    %23 = arith.sitofp %22 : vector<16x16xi32> to vector<16x16xf32>
    %24 = vector.extract_strided_slice %18 {offsets = [0, 0], sizes = [16, 16], strides = [1, 1]} : vector<48x16xf32> to vector<16x16xf32>
    %25 = arith.mulf %24, %23 : vector<16x16xf32>
    %cst_6 = arith.constant dense<0.000000e+00> : vector<16xf32>
    %26 = vector.multi_reduction <add>, %25, %cst_6 [0] : vector<16x16xf32> to vector<16xf32>
    %27 = vector.shape_cast %26 : vector<16xf32> to vector<1x16xf32>
    %28 = vector.extract_strided_slice %18 {offsets = [16, 0], sizes = [16, 16], strides = [1, 1]} : vector<48x16xf32> to vector<16x16xf32>
    %29 = arith.mulf %28, %23 : vector<16x16xf32>
    %cst_7 = arith.constant dense<0.000000e+00> : vector<16xf32>
    %30 = vector.multi_reduction <add>, %29, %cst_7 [0] : vector<16x16xf32> to vector<16xf32>
    %31 = vector.shape_cast %30 : vector<16xf32> to vector<1x16xf32>
    %32 = vector.extract_strided_slice %18 {offsets = [32, 0], sizes = [16, 16], strides = [1, 1]} : vector<48x16xf32> to vector<16x16xf32>
    %33 = arith.mulf %32, %23 : vector<16x16xf32>
    %cst_8 = arith.constant dense<0.000000e+00> : vector<16xf32>
    %34 = vector.multi_reduction <add>, %33, %cst_8 [0] : vector<16x16xf32> to vector<16xf32>
    %35 = vector.shape_cast %34 : vector<16xf32> to vector<1x16xf32>
    %36 = arith.mulf %35, %8 : vector<1x16xf32>
    %cst_9 = arith.constant 0.000000e+00 : f32
    %37 = vector.broadcast %cst_9 : f32 to vector<1x16xf32>
    %38 = arith.cmpf ogt, %36, %37 : vector<1x16xf32>
    %39 = arith.extui %38 : vector<1x16xi1> to vector<1x16xi32>
    %40 = arith.sitofp %39 : vector<1x16xi32> to vector<1x16xf32>
    %cst_10 = arith.constant 1.000000e+00 : f32
    %41 = vector.broadcast %cst_10 : f32 to vector<1x16xf32>
    %cst_11 = arith.constant 0.000000e+00 : f32
    %42 = vector.broadcast %cst_11 : f32 to vector<1x16xf32>
    %cst_12 = arith.constant 2.000000e+00 : f32
    %43 = vector.broadcast %cst_12 : f32 to vector<3x16xf32>
    %44 = arith.mulf %43, %7 : vector<3x16xf32>
    %45 = tpu.concatenate %27, %31, %42 in 0 : vector<1x16xf32>, vector<1x16xf32>, vector<1x16xf32> -> vector<3x16xf32>
    %46 = arith.addf %44, %45 : vector<3x16xf32>
    %47 = vector.broadcast %36 : vector<1x16xf32> to vector<3x16xf32>
    %48 = arith.mulf %47, %7 : vector<3x16xf32>
    %49 = tpu.concatenate %48, %36, %40 in 0 : vector<3x16xf32>, vector<1x16xf32>, vector<1x16xf32> -> vector<5x16xf32>
    %50 = tpu.concatenate %46, %41, %41 in 0 : vector<3x16xf32>, vector<1x16xf32>, vector<1x16xf32> -> vector<5x16xf32>
    %cst_13 = arith.constant dense<0.000000e+00> : vector<5x5xf32>
    %51 = tpu.matmul %49, %50, %cst_13 {dimension_numbers = #tpu.dot_dimension_numbers<[1], [1], [0], [0], [0, 0, 1, 0], [], []>} : vector<5x16xf32>, vector<5x16xf32>, vector<5x5xf32> -> vector<5x5xf32>
    %c0_14 = arith.constant 0 : index
    %c0_15 = arith.constant 0 : index
    %c0_16 = arith.constant 0 : index
    %c0_17 = arith.constant 0 : index
    %52 = vector.load %arg5[%c0_14, %c0_15, %c0_16, %c0_17] : memref<1x1x5x5xf32, #tpu.memory_space<vmem>>, vector<1x1x5x5xf32>
    %53 = vector.shape_cast %52 : vector<1x1x5x5xf32> to vector<5x5xf32>
    %54 = arith.addf %53, %51 : vector<5x5xf32>
    %c0_18 = arith.constant 0 : index
    %c0_19 = arith.constant 0 : index
    %c0_20 = arith.constant 0 : index
    %c0_21 = arith.constant 0 : index
    %55 = vector.load %arg5[%c0_18, %c0_19, %c0_20, %c0_21] : memref<1x1x5x5xf32, #tpu.memory_space<vmem>>, vector<1x1x5x5xf32>
    %56 = vector.shape_cast %55 : vector<1x1x5x5xf32> to vector<5x5xf32>
    %57 = vector.shape_cast %54 : vector<5x5xf32> to vector<1x1x5x5xf32>
    tpu.vector_store %arg5[%c0_18, %c0_19, %c0_20, %c0_21], %57 {strides = array<i32>} : memref<1x1x5x5xf32, #tpu.memory_space<vmem>>, vector<1x1x5x5xf32>,
    return
  }
  func.func @transform_0(%arg0: i32, %arg1: i32, %arg2: i32) -> (i32, i32, i32) {
    %c0_i32 = arith.constant 0 : i32
    %c0_i32_0 = arith.constant 0 : i32
    %c0_i32_1 = arith.constant 0 : i32
    return %arg0, %c0_i32, %c0_i32_0 : i32, i32, i32
  }
  func.func @transform_1(%arg0: i32, %arg1: i32, %arg2: i32) -> (i32, i32, i32) {
    %c1_i32 = arith.constant 1 : i32
    %0 = arith.muli %arg1, %c1_i32 : i32
    %1 = arith.addi %0, %arg2 : i32
    %c0_i32 = arith.constant 0 : i32
    %c0_i32_0 = arith.constant 0 : i32
    return %arg0, %c0_i32, %1 : i32, i32, i32
  }
  func.func @transform_2(%arg0: i32, %arg1: i32, %arg2: i32) -> (i32, i32, i32, i32) {
    %c0_i32 = arith.constant 0 : i32
    %c0_i32_0 = arith.constant 0 : i32
    %c0_i32_1 = arith.constant 0 : i32
    return %arg0, %arg1, %c0_i32, %c0_i32_0 : i32, i32, i32, i32
  }
}

</mosaic_0001>

<llo_original>
// kernel: tpu_custom_call.1
$region0: #{tpu_custom_call.1}
  #allocation0 [shape = 'u32[]', space=smem, size = 0x4, offset = 0x4, fixed_abs, tag = 'smem constant byte address 0x4 - core index']
  #allocation1 [shape = 'u32[144,128]{1,0:T(1,128)}', space=vmem, size = 0x12000, scoped, tag = 'internal scratch']
  %s0 = inlined_call_operand.vmem [shape: f32[2,48,16], index: 0, kind: input, shape index: {}]
  %s1 = inlined_call_operand.vmem [shape: f32[2,6,16], index: 1, kind: input, shape index: {}]
  %s2 = inlined_call_operand.vmem [shape: f32[2,1,5,5], index: 2, kind: output, shape index: {}]
  %s3 = sld [smem:[#allocation0]]
  $region45: #{tpu_custom_call.1} parent=0
    _
  %s5 = ssub.s32 1, %s3
  %s6 = scalar_select 0, %s5, %s3
  loop: start=0, step=1, limit=4
  $region2: #{tpu_custom_call.1} parent=0 // loop_pre_header
    _
  $region3: #{tpu_custom_call.1} parent=0 // loop_header
    %s8 = sphi 0, %s12
    %p9 = scmp.ge.s32.totalorder %s8, 4
    %s15 = sphi 0, %s34
    %s16 = sphi 0, %s30
    %s17 = sphi 0, %s26
    %s18 = sphi 0, %s15
    %s19 = sphi 0, %s16
    %s20 = sphi 0, %s17
    %s21 = sphi 0, %s18
    %s22 = sphi 0, %s19
    %s23 = sphi 0, %s20
    %s37 = sphi 0, %s39
    %s40 = sphi 0, %s37
    %s41 = sphi 0, %s40
    %s57 = sphi 0, %s41
    %s67 = sphi 0, %s69
    %s70 = sphi 0, %s67
    %s71 = sphi 0, %s70
    %s87 = sphi 0, %s71
    %s95 = sphi 0, %s97
    %s98 = sphi 0, %s95
    %s99 = sphi 0, %s98
    %s115 = sphi 0, %s99
  $region4: #{tpu_custom_call.1} parent=0 // loop_header_branch
    %11 = sbr.rel (%p9) target = $region8
  $region5: #{tpu_custom_call.1} parent=0 // loop_body
    %s13 = ssub.s32 %s8, 1
    %s14 = ssub.s32 %s8, 2
    %s24 = sadd.s32 1, %s17
    %p25 = scmp.ge.s32.totalorder %s24, 1
    %s26 = scalar_select %p25, 0, %s24
    %s27 = sadd.s32 1, %s16
    %s28 = scalar_select %p25, %s27, %s16
    %p29 = scmp.ge.s32.totalorder %s28, 1
    %s30 = scalar_select %p29, 0, %s28
    %s31 = sadd.s32 1, %s15
    %s32 = scalar_select %p29, %s31, %s15
    %p33 = scmp.ge.s32.totalorder %s32, 2
    %s34 = scalar_select %p33, 0, %s32
    %s35 = ssub.s32 %s15, %s34
    %p36 = scmp.eq.s32.totalorder %s35, 0
    %s38 = sadd.s32 %s37, 1
    %s39 = scalar_select %p36, %s37, %s38
    %p42 = pneg %p36
    %p43 = scmp.eq.s32.totalorder %s8, 1
    %p44 = por %p42, %p43
    %p45 = scmp.ne.s32.totalorder %s37, %s40
    %p46 = scmp.eq.s32.totalorder %s8, 0
    %p47 = por %p45, %p46
    %p48 = scmp.ne.s32.totalorder %s37, %s40
    %p49 = scmp.eq.s32.totalorder %s13, 1
    %p50 = por %p48, %p49
    %p51 = scmp.ne.s32.totalorder %s40, %s41
    %p52 = scmp.eq.s32.totalorder %s13, 0
    %p53 = por %p51, %p52
    %p54 = scmp.ne.s32.totalorder %s40, %s41
    %p55 = scmp.eq.s32.totalorder %s14, 1
    %p56 = por %p54, %p55
    %p58 = scmp.ne.s32.totalorder %s41, %s57
    %p59 = scmp.eq.s32.totalorder %s14, 0
    %p60 = por %p58, %p59
    %s61 = sadd.s32 %s16, %s17
    %s62 = sadd.s32 %s30, %s26
    %s63 = ssub.s32 %s15, %s34
    %s64 = ssub.s32 %s61, %s62
    %s65 = sor.u32 %s63, %s64
    %p66 = scmp.eq.s32.totalorder %s65, 0
    %s68 = sadd.s32 %s67, 1
    %s69 = scalar_select %p66, %s67, %s68
    %p72 = pneg %p66
    %p73 = scmp.eq.s32.totalorder %s8, 1
    %p74 = por %p72, %p73
    %p75 = scmp.ne.s32.totalorder %s67, %s70
    %p76 = scmp.eq.s32.totalorder %s8, 0
    %p77 = por %p75, %p76
    %p78 = scmp.ne.s32.totalorder %s67, %s70
    %p79 = scmp.eq.s32.totalorder %s13, 1
    %p80 = por %p78, %p79
    %p81 = scmp.ne.s32.totalorder %s70, %s71
    %p82 = scmp.eq.s32.totalorder %s13, 0
    %p83 = por %p81, %p82
    %p84 = scmp.ne.s32.totalorder %s70, %s71
    %p85 = scmp.eq.s32.totalorder %s14, 1
    %p86 = por %p84, %p85
    %p88 = scmp.ne.s32.totalorder %s71, %s87
    %p89 = scmp.eq.s32.totalorder %s14, 0
    %p90 = por %p88, %p89
    %s91 = ssub.s32 %s15, %s34
    %s92 = ssub.s32 %s16, %s30
    %s93 = sor.u32 %s91, %s92
    %p94 = scmp.eq.s32.totalorder %s93, 0
    %s96 = sadd.s32 %s95, 1
    %s97 = scalar_select %p94, %s95, %s96
    %p100 = pneg %p94
    %p101 = scmp.eq.s32.totalorder %s8, 1
    %p102 = por %p100, %p101
    %p103 = scmp.ne.s32.totalorder %s95, %s98
    %p104 = scmp.eq.s32.totalorder %s8, 0
    %p105 = por %p103, %p104
    %p106 = scmp.ne.s32.totalorder %s95, %s98
    %p107 = scmp.eq.s32.totalorder %s13, 1
    %p108 = por %p106, %p107
    %p109 = scmp.ne.s32.totalorder %s98, %s99
    %p110 = scmp.eq.s32.totalorder %s13, 0
    %p111 = por %p109, %p110
    %p112 = scmp.ne.s32.totalorder %s98, %s99
    %p113 = scmp.eq.s32.totalorder %s14, 1
    %p114 = por %p112, %p113
    %p116 = scmp.ne.s32.totalorder %s99, %s115
    %p117 = scmp.eq.s32.totalorder %s14, 0
    %p118 = por %p116, %p117
    %p119 = scmp.le.s32.totalorder 1, %s8
    %p120 = scmp.lt.s32.totalorder %s8, 3
    %p121 = pnand %p119, %p120
    %p122 = pneg %p121
    // Predicated region
    $region9: #{tpu_custom_call.1} parent=5 // pred_check
      _
    $region10: #{tpu_custom_call.1} parent=5 // pred_check_branch
      %124 = sbr.rel (%p121) target = $region12
    $region11: #{tpu_custom_call.1} parent=5 // pred_region
      %s125 = ssub.s32 %s8, 1
    $region12: #{tpu_custom_call.1} parent=5 // pred_fallthru
      _
    %p126 = scmp.lt.s32.totalorder %s8, 2
    // Predicated region
    $region13: #{tpu_custom_call.1} parent=5 // pred_check
      %p127 = pneg %p126
    $region14: #{tpu_custom_call.1} parent=5 // pred_check_branch
      %129 = sbr.rel (%p127) target = $region16
    $region15: #{tpu_custom_call.1} parent=5 // pred_region
      // Predicated region
      $region17: #{tpu_custom_call.1} parent=15 // pred_check
        %p130 = pneg %p47
      $region18: #{tpu_custom_call.1} parent=15 // pred_check_branch
        %132 = sbr.rel (%p130) target = $region20
      $region19: #{tpu_custom_call.1} parent=15 // pred_region
        %p133 = scmp.lt.s32.totalorder %s15, 1
        %s134 = scalar_select %p133, %s15, 1
        %s135 = smul.addr %s134, 6
        %s136 = smul.addr %s135, 8
        %s137 = scalar_lea.vmem %s0, %s136
      $region20: #{tpu_custom_call.1} parent=15 // pred_fallthru
        _
      // Predicated region
      $region21: #{tpu_custom_call.1} parent=15 // pred_check
        %p138 = pneg %p77
      $region22: #{tpu_custom_call.1} parent=15 // pred_check_branch
        %140 = sbr.rel (%p138) target = $region24
      $region23: #{tpu_custom_call.1} parent=15 // pred_region
        %s141 = sadd.s32 %s16, %s17
        %p142 = scmp.lt.s32.totalorder %s15, 1
        %s143 = scalar_select %p142, %s15, 1
        %p144 = scmp.lt.s32.totalorder %s141, 0
        %s145 = scalar_select %p144, %s141, 0
        %s146 = sadd.s32 %s145, %s143
        %s147 = smul.addr %s146, 8
        %s148 = scalar_lea.vmem %s1, %s147
        %s149 = sadd.s32 %s16, %s17
      $region24: #{tpu_custom_call.1} parent=15 // pred_fallthru
        _
    $region16: #{tpu_custom_call.1} parent=5 // pred_fallthru
      _
    %p150 = scmp.le.s32.totalorder 1, %s8
    %p151 = scmp.lt.s32.totalorder %s8, 3
    %p152 = pnand %p150, %p151
    %p153 = pneg %p152
    // Predicated region
    $region25: #{tpu_custom_call.1} parent=5 // pred_check
      _
    $region26: #{tpu_custom_call.1} parent=5 // pred_check_branch
      %155 = sbr.rel (%p152) target = $region28
    $region27: #{tpu_custom_call.1} parent=5 // pred_region
      %s156 = ssub.s32 %s8, 1
      %p157 = scmp.lt.s32.totalorder %s18, 1
      %s158 = scalar_select %p157, %s18, 1
      %s159 = smul.addr %s158, 6
      %s160 = smul.addr %s159, 8
      %s161 = scalar_lea.vmem %s0, %s160
      %p162 = pneg %p53
      %p163 = pneg %p50
      %s164 = sadd.s32 %s19, %s20
      %p165 = scmp.lt.s32.totalorder %s18, 1
      %s166 = scalar_select %p165, %s18, 1
      %p167 = scmp.lt.s32.totalorder %s164, 0
      %s168 = scalar_select %p167, %s164, 0
      %s169 = sadd.s32 %s168, %s166
      %s170 = smul.addr %s169, 8
      %s171 = scalar_lea.vmem %s1, %s170
      %p172 = pneg %p83
      %p173 = pneg %p80
      %p174 = pneg %p111
      %p175 = pneg %p108
      %p176 = scmp.lt.s32.totalorder %s18, 1
      %s177 = scalar_select %p176, %s18, 1
      %p178 = scmp.lt.s32.totalorder %s19, 0
      %s179 = scalar_select %p178, %s19, 0
      %s180 = sadd.s32 %s179, %s177
      %s181 = smul.addr %s180, 8
      %s182 = scalar_lea.vmem %s2, %s181
      %p183 = scmp.lt.s32.totalorder %s18, 1
      %s184 = scalar_select %p183, %s18, 1
      %s185 = smul.addr %s184, 6
      %s186 = smul.addr %s185, 8
      %s187 = scalar_lea.vmem %s0, %s186
      %s188 = sadd.s32 %s19, %s20
      %p189 = scmp.lt.s32.totalorder %s18, 1
      %s190 = scalar_select %p189, %s18, 1
      %p191 = scmp.lt.s32.totalorder %s188, 0
      %s192 = scalar_select %p191, %s188, 0
      %s193 = sadd.s32 %s192, %s190
      %s194 = smul.addr %s193, 8
      %s195 = scalar_lea.vmem %s1, %s194
      %s196 = sadd.s32 %s19, %s20
      %p197 = scmp.lt.s32.totalorder %s18, 1
      %s198 = scalar_select %p197, %s18, 1
      %p199 = scmp.lt.s32.totalorder %s19, 0
      %s200 = scalar_select %p199, %s19, 0
      %s201 = sadd.s32 %s200, %s198
      %s202 = smul.addr %s201, 8
      %s203 = scalar_lea.vmem %s2, %s202
      %p204 = scmp.eq.s32.totalorder %s20, 0
      // Predicated region
      $region29: #{tpu_custom_call.1} parent=27 // pred_check
        %p205 = pneg %p204
      $region30: #{tpu_custom_call.1} parent=27 // pred_check_branch
        %207 = sbr.rel (%p205) target = $region32
      $region31: #{tpu_custom_call.1} parent=27 // pred_region
        %vm208 = vcmask 36864
        %209 = vst.msk [vmem:[%s203] sm:$0x1f] %vm208, 0.0
      $region32: #{tpu_custom_call.1} parent=27 // pred_fallthru
        _
      %v210 = vld [vmem:[%s187] sm:$0xff]
      %v211 = vld [vmem:[%s187 + $0x8] sm:$0xff]
      %v212 = vld [vmem:[%s187 + $0x10] sm:$0xff]
      %v213 = vld [vmem:[%s187 + $0x18] sm:$0xff]
      %v214 = vld [vmem:[%s187 + $0x20] sm:$0xff]
      %v215 = vld [vmem:[%s187 + $0x28] sm:$0xff]
      %v216 = vld [vmem:[%s195] sm:$0x3f]
      %v217 = vcvt.f32.s32.to.zero.pseudo %v216
      %v218 = vlaneseq
      %v219 = vshrl.u32 %v218, 7
      %v220 = vadd.s32 %v219, 8
      %v221 = vlaneseq
      %v222 = vshrl.u32 %v221, 7
      %v223 = vsub.s32 5, %v222
      %v224 = vrot.slane %v217, %v223
      %vm225 = vcmp.eq.s32.totalorder %v219, %v224
      %vm226 = vcmp.eq.s32.totalorder %v220, %v224
      %v227 = vsel %vm225, 1, 0
      %v228 = vsel %vm226, 1, 0
      %v229 = vcvt.s32.f32 %v227
      %v230 = vcvt.s32.f32 %v228
      %vm231 = vcmask 130048
      %v233 = vsel %vm231, %v210, 0
      %v236 = vsel %vm231, %v211, 0
      %v239 = vsel %vm231, %v212, 0
      %v242 = vsel %vm231, %v213, 0
      %v245 = vsel %vm231, %v214, 0
      %v248 = vsel %vm231, %v215, 0
      %250 = vmatprep.subr.mxu0 0.0
      %251 = vmatpush1.msra.mxu0 %v229
      %252 = vmatprep.subr.mxu0 0.0
      %253 = vmatpush1.msra.mxu0 %v230
      %254 = vmatprep.subr.mxu0 0.0
      %255 = vmatpush1.msra.mxu0 0.0
      %256 = vmatprep.subr.mxu0 0.0
      %257 = vmatpush1.msra.mxu0 0.0
      %258 = vmatprep.subr.mxu0 0.0
      %259 = vmatpush1.msra.mxu0 0.0
      %260 = vmatprep.subr.mxu0 0.0
      %261 = vmatpush1.msra.mxu0 0.0
      %262 = vmatprep.subr.mxu0 0.0
      %263 = vmatpush1.msra.mxu0 0.0
      %264 = vmatprep.subr.mxu0 0.0
      %265 = vmatpush1.msra.mxu0 0.0
      %266 = vmatprep.subr.mxu0 0.0
      %267 = vmatpush1.msra.mxu0 0.0
      %268 = vmatprep.subr.mxu0 0.0
      %269 = vmatpush1.msra.mxu0 0.0
      %270 = vmatprep.subr.mxu0 0.0
      %271 = vmatpush1.msra.mxu0 0.0
      %272 = vmatprep.subr.mxu0 0.0
      %273 = vmatpush1.msra.mxu0 0.0
      %274 = vmatprep.subr.mxu0 0.0
      %275 = vmatpush1.msra.mxu0 0.0
      %276 = vmatprep.subr.mxu0 0.0
      %277 = vmatpush1.msra.mxu0 0.0
      %278 = vmatprep.subr.mxu0 0.0
      %279 = vmatpush1.msra.mxu0 0.0
      %280 = vmatprep.subr.mxu0 0.0
      %281 = vmatpush1.msra.mxu0 0.0
      %282 = vmatprep.subr.mxu0 0.0
      %283 = vmatpush1.msra.mxu0 0.0
      %284 = vmatprep.subr.mxu0 0.0
      %285 = vmatpush1.msra.mxu0 0.0
      %286 = vmatprep.subr.mxu0 0.0
      %287 = vmatpush1.msra.mxu0 0.0
      %288 = vmatprep.subr.mxu0 0.0
      %289 = vmatpush1.msra.mxu0 0.0
      %290 = vmatprep.subr.mxu0 0.0
      %291 = vmatpush1.msra.mxu0 0.0
      %292 = vmatprep.subr.mxu0 0.0
      %293 = vmatpush1.msra.mxu0 0.0
      %294 = vmatprep.subr.mxu0 0.0
      %295 = vmatpush1.msra.mxu0 0.0
      %296 = vmatprep.subr.mxu0 0.0
      %297 = vmatpush1.msra.mxu0 0.0
      %298 = vmatprep.subr.mxu0 0.0
      %299 = vmatpush1.msra.mxu0 0.0
      %300 = vmatprep.subr.mxu0 0.0
      %301 = vmatpush1.msra.mxu0 0.0
      %302 = vmatprep.subr.mxu0 0.0
      %303 = vmatpush1.msra.mxu0 0.0
      %304 = vmatprep.subr.mxu0 0.0
      %305 = vmatpush1.msra.mxu0 0.0
      %306 = vmatprep.subr.mxu0 0.0
      %307 = vmatpush1.msra.mxu0 0.0
      %308 = vmatprep.subr.mxu0 0.0
      %309 = vmatpush1.msra.mxu0 0.0
      %310 = vmatprep.subr.mxu0 0.0
      %311 = vmatpush1.msra.mxu0 0.0
      %312 = vmatprep.subr.mxu0 0.0
      %313 = vmatpush1.msra.mxu0 0.0
      %314 = vmatprep.mubr.f32.mxu0 0.0
      %315 = vmatmul.mubr.f32.gmra.mrb[0].mxu0 %v233
      %v316 = vpop.f32.mrb[0].mxu0
      %v317 = vadd.f32 0.0, %v316
      %v318 = vpop.f32.mrb[0].mxu0
      %319 = vmatprep.mubr.f32.mxu0 0.0
      %320 = vmatmul.mubr.f32.gmra.mrb[0].mxu0 %v236
      %v321 = vpop.f32.mrb[0].mxu0
      %v322 = vadd.f32 0.0, %v321
      %v323 = vpop.f32.mrb[0].mxu0
      %324 = vmatprep.mubr.f32.mxu0 0.0
      %325 = vmatmul.mubr.f32.gmra.mrb[0].mxu0 %v239
      %v326 = vpop.f32.mrb[0].mxu0
      %v327 = vadd.f32 0.0, %v326
      %v328 = vpop.f32.mrb[0].mxu0
      %329 = vmatprep.mubr.f32.mxu0 0.0
      %330 = vmatmul.mubr.f32.gmra.mrb[0].mxu0 %v242
      %v331 = vpop.f32.mrb[0].mxu0
      %v332 = vadd.f32 0.0, %v331
      %v333 = vpop.f32.mrb[0].mxu0
      %334 = vmatprep.mubr.f32.mxu0 0.0
      %335 = vmatmul.mubr.f32.gmra.mrb[0].mxu0 %v245
      %v336 = vpop.f32.mrb[0].mxu0
      %v337 = vadd.f32 0.0, %v336
      %v338 = vpop.f32.mrb[0].mxu0
      %339 = vmatprep.mubr.f32.mxu0 0.0
      %340 = vmatmul.mubr.f32.gmra.mrb[0].mxu0 %v248
      %v341 = vpop.f32.mrb[0].mxu0
      %v342 = vadd.f32 0.0, %v341
      %v343 = vpop.f32.mrb[0].mxu0
      %344 = vdwg.mxu0
      %v345 = vlaneseq
      %v346 = vshrl.u32 %v345, 7
      %v347 = vsub.s32 4, %v346
      %v348 = vrot.slane %v217, %v347
      %vm349 = vcmp.eq.s32.totalorder %v219, %v348
      %vm350 = vcmp.eq.s32.totalorder %v220, %v348
      %v351 = vsel %vm349, 1, 0
      %v352 = vsel %vm350, 1, 0
      %v353 = vcvt.s32.f32 %v351
      %v354 = vcvt.s32.f32 %v352
      %v355 = vmul.f32 %v317, %v353
      %v356 = vmul.f32 %v322, %v354
      %v357 = vsel %vm231, %v355, 0.0
      %v358 = vsel %vm231, %v356, 0.0
      %v359 = vadd.f32 %v357, %v358
      %v360 = vrot.slane %v359, 4
      %v361 = vadd.f32 %v359, %v360
      %v362 = vrot.slane %v361, 2
      %v363 = vadd.f32 %v361, %v362
      %v364 = vrot.slane %v363, 1
      %v365 = vadd.f32 %v363, %v364
      %v366 = vmul.f32 %v327, %v353
      %v367 = vmul.f32 %v332, %v354
      %v368 = vsel %vm231, %v366, 0.0
      %v369 = vsel %vm231, %v367, 0.0
      %v370 = vadd.f32 %v368, %v369
      %v371 = vrot.slane %v370, 4
      %v372 = vadd.f32 %v370, %v371
      %v373 = vrot.slane %v372, 2
      %v374 = vadd.f32 %v372, %v373
      %v375 = vrot.slane %v374, 1
      %v376 = vadd.f32 %v374, %v375
      %v377 = vmul.f32 %v337, %v353
      %v378 = vmul.f32 %v342, %v354
      %v379 = vsel %vm231, %v377, 0.0
      %v380 = vsel %vm231, %v378, 0.0
      %v381 = vadd.f32 %v379, %v380
      %v382 = vrot.slane %v381, 4
      %v383 = vadd.f32 %v381, %v382
      %v384 = vrot.slane %v383, 2
      %v385 = vadd.f32 %v383, %v384
      %v386 = vrot.slane %v385, 1
      %v387 = vadd.f32 %v385, %v386
      %v388 = vmul.f32 %v387, %v216
      %vm389 = vcmp.gt.f32.partialorder %v388, 0.0
      %v390 = vsel %vm389, 1, 0
      %v391 = vcvt.s32.f32 %v390
      %v392 = vmul.f32 %v216, 2.0
      %vm393 = vcmask 1040384
      %v394 = vsel %vm393, %v365, %v376
      %vm395 = vcmask 1041408
      %v396 = vsel %vm395, %v394, 0.0
      %v397 = vadd.f32 %v392, %v396
      %v398 = vlaneseq
      %v399 = vshrl.u32 %v398, 7
      %v400 = vsub.s32 3, %v399
      %v401 = vrot.slane %v388, %v400
      %v402 = vmul.f32 %v401, %v216
      %v404 = vrot.slane %v391, 7
      %vm406 = vcmask 1042432
      %v407 = vsel %vm406, %v402, %v388
      %vm408 = vcmask 1043456
      %v409 = vsel %vm408, %v407, %v404
      %v410 = vsel %vm406, %v397, 1.0
      %v411 = vsel %vm408, %v410, 1.0
      %v413 = vsel %vm231, %v409, 0
      %v416 = vsel %vm231, %v411, 0
      %418 = vmatprep.subr.mxu0 0.0
      %419 = vmatpush1.xpose.msra.mxu0 %v416
      %420 = vmatprep.subr.mxu0 0.0
      %421 = vmatpush1.xpose.msra.mxu0 0.0
      %422 = vmatprep.subr.mxu0 0.0
      %423 = vmatpush1.xpose.msra.mxu0 0.0
      %424 = vmatprep.subr.mxu0 0.0
      %425 = vmatpush1.xpose.msra.mxu0 0.0
      %426 = vmatprep.subr.mxu0 0.0
      %427 = vmatpush1.xpose.msra.mxu0 0.0
      %428 = vmatprep.subr.mxu0 0.0
      %429 = vmatpush1.xpose.msra.mxu0 0.0
      %430 = vmatprep.subr.mxu0 0.0
      %431 = vmatpush1.xpose.msra.mxu0 0.0
      %432 = vmatprep.subr.mxu0 0.0
      %433 = vmatpush1.xpose.msra.mxu0 0.0
      %434 = vmatprep.subr.mxu0 0.0
      %435 = vmatpush1.xpose.msra.mxu0 0.0
      %436 = vmatprep.subr.mxu0 0.0
      %437 = vmatpush1.xpose.msra.mxu0 0.0
      %438 = vmatprep.subr.mxu0 0.0
      %439 = vmatpush1.xpose.msra.mxu0 0.0
      %440 = vmatprep.subr.mxu0 0.0
      %441 = vmatpush1.xpose.msra.mxu0 0.0
      %442 = vmatprep.subr.mxu0 0.0
      %443 = vmatpush1.xpose.msra.mxu0 0.0
      %444 = vmatprep.subr.mxu0 0.0
      %445 = vmatpush1.xpose.msra.mxu0 0.0
      %446 = vmatprep.subr.mxu0 0.0
      %447 = vmatpush1.xpose.msra.mxu0 0.0
      %448 = vmatprep.subr.mxu0 0.0
      %449 = vmatpush1.xpose.msra.mxu0 0.0
      %450 = vmatprep.subr.mxu0 0.0
      %451 = vmatpush1.xpose.msra.mxu0 0.0
      %452 = vmatprep.subr.mxu0 0.0
      %453 = vmatpush1.xpose.msra.mxu0 0.0
      %454 = vmatprep.subr.mxu0 0.0
      %455 = vmatpush1.xpose.msra.mxu0 0.0
      %456 = vmatprep.subr.mxu0 0.0
      %457 = vmatpush1.xpose.msra.mxu0 0.0
      %458 = vmatprep.subr.mxu0 0.0
      %459 = vmatpush1.xpose.msra.mxu0 0.0
      %460 = vmatprep.subr.mxu0 0.0
      %461 = vmatpush1.xpose.msra.mxu0 0.0
      %462 = vmatprep.subr.mxu0 0.0
      %463 = vmatpush1.xpose.msra.mxu0 0.0
      %464 = vmatprep.subr.mxu0 0.0
      %465 = vmatpush1.xpose.msra.mxu0 0.0
      %466 = vmatprep.subr.mxu0 0.0
      %467 = vmatpush1.xpose.msra.mxu0 0.0
      %468 = vmatprep.subr.mxu0 0.0
      %469 = vmatpush1.xpose.msra.mxu0 0.0
      %470 = vmatprep.subr.mxu0 0.0
      %471 = vmatpush1.xpose.msra.mxu0 0.0
      %472 = vmatprep.subr.mxu0 0.0
      %473 = vmatpush1.xpose.msra.mxu0 0.0
      %474 = vmatprep.subr.mxu0 0.0
      %475 = vmatpush1.xpose.msra.mxu0 0.0
      %476 = vmatprep.subr.mxu0 0.0
      %477 = vmatpush1.xpose.msra.mxu0 0.0
      %478 = vmatprep.subr.mxu0 0.0
      %479 = vmatpush1.xpose.msra.mxu0 0.0
      %480 = vmatprep.subr.mxu0 0.0
      %481 = vmatpush1.xpose.msra.mxu0 0.0
      %482 = vmatprep.mubr.f32.mxu0 0.0
      %483 = vmatmul.mubr.f32.gmra.mrb[0].mxu0 %v413
      %v484 = vpop.f32.mrb[0].mxu0
      %v485 = vadd.f32 0.0, %v484
      %v486 = vpop.f32.mrb[0].mxu0
      %487 = vdwg.mxu0
      %v488 = vld [vmem:[%s203] sm:$0x1f]
      %v489 = vadd.f32 %v488, %v485
      %vm490 = vcmask 36864
      %491 = vst.msk [vmem:[%s203] sm:$0x1f] %vm490, %v489
      %p492 = scmp.lt.s32.totalorder %s18, 1
      %s493 = scalar_select %p492, %s18, 1
      %p494 = scmp.lt.s32.totalorder %s19, 0
      %s495 = scalar_select %p494, %s19, 0
      %s496 = sadd.s32 %s495, %s493
      %s497 = smul.addr %s496, 8
      %s498 = scalar_lea.vmem %s2, %s497
      // Predicated region
      $region33: #{tpu_custom_call.1} parent=27 // pred_check
        %p499 = pneg %p108
      $region34: #{tpu_custom_call.1} parent=27 // pred_check_branch
        %501 = sbr.rel (%p499) target = $region36
      $region35: #{tpu_custom_call.1} parent=27 // pred_region
        _
      $region36: #{tpu_custom_call.1} parent=27 // pred_fallthru
        _
    $region28: #{tpu_custom_call.1} parent=5 // pred_fallthru
      _
    %p502 = scmp.le.s32.totalorder 2, %s8
    // Predicated region
    $region37: #{tpu_custom_call.1} parent=5 // pred_check
      %p503 = pneg %p502
    $region38: #{tpu_custom_call.1} parent=5 // pred_check_branch
      %505 = sbr.rel (%p503) target = $region40
    $region39: #{tpu_custom_call.1} parent=5 // pred_region
      %s506 = ssub.s32 %s8, 2
      // Predicated region
      $region41: #{tpu_custom_call.1} parent=39 // pred_check
        %p507 = pneg %p114
      $region42: #{tpu_custom_call.1} parent=39 // pred_check_branch
        %509 = sbr.rel (%p507) target = $region44
      $region43: #{tpu_custom_call.1} parent=39 // pred_region
        %p510 = scmp.lt.s32.totalorder %s21, 1
        %s511 = scalar_select %p510, %s21, 1
        %p512 = scmp.lt.s32.totalorder %s22, 0
        %s513 = scalar_select %p512, %s22, 0
        %s514 = sadd.s32 %s513, %s511
        %s515 = smul.addr %s514, 8
        %s516 = scalar_lea.vmem %s2, %s515
      $region44: #{tpu_custom_call.1} parent=39 // pred_fallthru
        _
    $region40: #{tpu_custom_call.1} parent=5 // pred_fallthru
      _
  $region6: #{tpu_custom_call.1} parent=0 // loop_footer
    %s12 = sadd.s32 1, %s8
  $region7: #{tpu_custom_call.1} parent=0 // loop_footer_branch
    %7 = sbr.rel target = $region3
  $region8: #{tpu_custom_call.1} parent=0 // loop_exit
    _

</llo_original>
